<compile_context>
chip_gen: v7x
topology: tpu7x:2x2x1
jax: 0.10.0
libtpu: 0.0.40
codegen_flags: <defaults>
</compile_context>

<pallas_src>
import functools

import jax
import jax.numpy as jnp
from jax import lax
from jax.experimental import pallas as pl
from jax.experimental.pallas import tpu as pltpu


# ----------------------------------------------------------------------------
# Tiling helpers
# ----------------------------------------------------------------------------
def _vmem_capacity_bytes():
    """Physical VMEM of the current generation (v5e/v6e 128 MiB, v7x 64 MiB)."""
    try:
        return int(pltpu.get_tpu_info().vmem_capacity_bytes)
    except Exception:
        return 64 * 1024 * 1024  # v7x-safe fallback


def _pick_spatial_tile(S, granule, per_spatial_bytes, min_blocks, budget):
    """Largest `granule`-multiple spatial tile whose double-buffered (in+out)
    working set fits `budget`, shrunk (never below one granule) until the
    spatial grid has at least `min_blocks` entries (feeds both v7x cores)."""
    if S <= granule:
        return S
    max_t = max(granule, (budget // (2 * per_spatial_bytes)) // granule * granule)
    t = min(max_t, (S // granule) * granule)
    while t > granule and pl.cdiv(S, t) < min_blocks:
        t = max(granule, (t // 2) // granule * granule)
    return t


# ----------------------------------------------------------------------------
# Kernel 1: lane-dense "cmaj" layout (attributes on sublanes, spatial on lanes)
# ----------------------------------------------------------------------------
def _decode_cmaj_kernel(x_ref, o_ref, *, nA, A, nG, stride, anchors):
    C, St = x_ref.shape  # block: (nA*A, s_tile)
    f_stride = jnp.float32(stride)
    inv_nG = jnp.float32(1.0 / nG)
    nG_f = jnp.float32(nG)

    # Grid offsets for this lane tile.  f32 math is exact (indices < 2^24);
    # the +0.5 guards floor() against 1/nG rounding for non-power-of-two nG.
    s0 = pl.program_id(1) * St
    lane = (lax.broadcasted_iota(jnp.int32, (2, St), 1) + s0).astype(jnp.float32)
    gy = jnp.floor((lane + 0.5) * inv_nG)
    gx = lane - nG_f * gy
    row = lax.broadcasted_iota(jnp.int32, (2, St), 0)
    gxy = jnp.where(row == 0, gx, gy)  # row 0 -> x (W index), row 1 -> y (H index)

    for a in range(nA):  # static unroll, nA is tiny
        r = a * A
        xy = x_ref[r:r + 2, :].astype(jnp.float32)
        wh = x_ref[r + 2:r + 4, :].astype(jnp.float32)
        rest = x_ref[r + 4:r + A, :].astype(jnp.float32)

        # Sliced transcendentals: sigmoid only where needed, exp only on w/h.
        sig_xy = pl.reciprocal(1.0 + jnp.exp(-xy), approx=True)
        sig_rest = pl.reciprocal(1.0 + jnp.exp(-rest), approx=True)
        ewh = jnp.exp(wh)

        # Direct sub-range stores (no sublane-axis concatenate / extra temp).
        o_ref[r:r + 2, :] = (sig_xy + gxy) * f_stride
        o_ref[r + 2:r + 3, :] = ewh[0:1, :] * jnp.float32(anchors[a][0] * stride)
        o_ref[r + 3:r + 4, :] = ewh[1:2, :] * jnp.float32(anchors[a][1] * stride)
        o_ref[r + 4:r + A, :] = sig_rest


# ----------------------------------------------------------------------------
# Kernel 2: fused "perm" layout (spatial on sublanes, anchor*attr on lanes);
# output already matches the torch (bs, nG, nG, nA, 5+nC) layout -> no
# post-kernel transpose pass.
# ----------------------------------------------------------------------------
def _decode_perm_kernel(x_ref, o_ref, *, nA, A, nG, stride, anchors):
    St, C = x_ref.shape  # block: (s_tile, nA*A)
    f_stride = jnp.float32(stride)
    inv_nG = jnp.float32(1.0 / nG)
    nG_f = jnp.float32(nG)
    inv_A = jnp.float32(1.0 / A)
    A_f = jnp.float32(A)

    # Per-sublane grid offsets (exact f32 integer math, no int div/mod).
    s0 = pl.program_id(1) * St
    sp = (lax.broadcasted_iota(jnp.int32, (St, 1), 0) + s0).astype(jnp.float32)
    gy = jnp.floor((sp + 0.5) * inv_nG)
    gx = sp - nG_f * gy

    # Per-lane attribute / anchor classification: tiny (1, C) workload.
    lane = lax.broadcasted_iota(jnp.int32, (1, C), 1).astype(jnp.float32)
    anc = jnp.floor((lane + 0.5) * inv_A)
    attr = lane - A_f * anc
    is_x = attr == 0.0
    is_y = attr == 1.0
    is_w = attr == 2.0
    is_h = attr == 3.0
    aw = jnp.full((1, C), anchors[0][0], jnp.float32)
    ah = jnp.full((1, C), anchors[0][1], jnp.float32)
    for i in range(1, nA):
        sel = anc == jnp.float32(i)
        aw = jnp.where(sel, jnp.float32(anchors[i][0]), aw)
        ah = jnp.where(sel, jnp.float32(anchors[i][1]), ah)
    scale = jnp.where(is_x | is_y, f_stride,
                      jnp.where(is_w, aw * f_stride,
                                jnp.where(is_h, ah * f_stride, jnp.float32(1.0))))

    v = x_ref[...].astype(jnp.float32)
    sig = pl.reciprocal(1.0 + jnp.exp(-v), approx=True)
    ex = jnp.exp(v)
    base = jnp.where(is_w | is_h, ex, sig)
    offs = jnp.where(is_x, gx, 0.0) + jnp.where(is_y, gy, 0.0)

    # Single full-tile store covering the whole lane extent.
    o_ref[...] = (base + offs) * scale


# ----------------------------------------------------------------------------
# Wrapper reproducing Yolo_head.forward: returns (p_permuted, p_decoded)
# ----------------------------------------------------------------------------
def yolo_head_forward(p_nchw, anchors, stride, nC, training=False):
    bs, nG = p_nchw.shape[0], p_nchw.shape[-1]
    nA = len(anchors)
    A = 5 + nC
    C = nA * A
    S = nG * nG
    stride = float(stride)
    # Anchors/stride mirror nn.Module attributes: treated as trace-time
    # constants (pass concrete values; do not trace them under jit).
    anchors_t = tuple((float(a[0]), float(a[1])) for a in anchors)

    # First return value: view + permute(0,3,4,1,2).  This transpose is a
    # mandatory output of the module in every implementation.
    p_perm = p_nchw.reshape(bs, nA, A, nG, nG).transpose(0, 3, 4, 1, 2)

    # Generation-aware VMEM budgeting (v5e/v6e 128 MiB, v7x 64 MiB).
    vmem_cap = _vmem_capacity_bytes()
    budget = max(4 << 20, min(vmem_cap // 8, 16 << 20))  # 2*(in+out) working set
    vmem_limit = int(min(vmem_cap // 2, 64 << 20))
    in_bytes = jnp.dtype(p_nchw.dtype).itemsize
    per_spatial = C * (in_bytes + 4)            # input + f32 output bytes per cell
    min_blocks = max(1, -(-4 // bs))            # keep >= 4 parallel grid entries
    cparams = pltpu.CompilerParams(
        dimension_semantics=("parallel", "parallel"),
        vmem_limit_bytes=vmem_limit)

    lane_util = C / float(pl.cdiv(C, 128) * 128)

    if lane_util >= 0.75:
        # ---- Fused path: decode straight from the permuted layout; the
        # decoded tensor needs no further transpose (saves a full HBM pass).
        x = p_perm.reshape(bs, S, C)            # free reshape of mandatory output
        s_tile = _pick_spatial_tile(S, 8, per_spatial, min_blocks, budget)
        n_s = pl.cdiv(S, s_tile)
        dec = pl.pallas_call(
            functools.partial(_decode_perm_kernel, nA=nA, A=A, nG=nG,
                              stride=stride, anchors=anchors_t),
            out_shape=jax.ShapeDtypeStruct((bs, S, C), jnp.float32),
            grid=(bs, n_s),
            in_specs=[pl.BlockSpec((None, s_tile, C), lambda b, s: (b, s, 0))],
            out_specs=pl.BlockSpec((None, s_tile, C), lambda b, s: (b, s, 0)),
            compiler_params=cparams,
        )(x)
        p_de = dec.reshape(bs, nG, nG, nA, A)
    else:
        # ---- Lane-dense cmaj path: attributes on sublanes, spatial on lanes.
        x = p_nchw.reshape(bs, C, S)            # free reshape of contiguous NCHW
        s_tile = _pick_spatial_tile(S, 128, per_spatial, min_blocks, budget)
        n_s = pl.cdiv(S, s_tile)
        dec = pl.pallas_call(
            functools.partial(_decode_cmaj_kernel, nA=nA, A=A, nG=nG,
                              stride=stride, anchors=anchors_t),
            out_shape=jax.ShapeDtypeStruct((bs, C, S), jnp.float32),
            grid=(bs, n_s),
            in_specs=[pl.BlockSpec((None, C, s_tile), lambda b, s: (b, 0, s))],
            out_specs=pl.BlockSpec((None, C, s_tile), lambda b, s: (b, 0, s)),
            compiler_params=cparams,
        )(x)
        # For lane-sparse heads the permute stays in XLA where stores remain
        # dense (folding it in-kernel would force <128-lane masked stores).
        p_de = dec.reshape(bs, nA, A, nG, nG).transpose(0, 3, 4, 1, 2)

    if not training:
        p_de = p_de.reshape(-1, A)
    return p_perm, p_de


# ----------------------------------------------------------------------------
# Pure-JAX reference replica of the PyTorch forward (for verification)
# ----------------------------------------------------------------------------
def _reference_forward(p_nchw, anchors, stride, nC, training=False):
    bs, nG = p_nchw.shape[0], p_nchw.shape[-1]
    nA = len(anchors)
    A = 5 + nC
    p = p_nchw.reshape(bs, nA, A, nG, nG).transpose(0, 3, 4, 1, 2)
    pf = p.astype(jnp.float32)
    sig = lambda v: 1.0 / (1.0 + jnp.exp(-v))

    dxdy, dwdh = pf[..., 0:2], pf[..., 2:4]
    conf, prob = pf[..., 4:5], pf[..., 5:]

    y = jnp.tile(jnp.arange(nG)[:, None], (1, nG))
    x = jnp.tile(jnp.arange(nG)[None, :], (nG, 1))
    grid_xy = jnp.stack([x, y], axis=-1).astype(jnp.float32)
    grid_xy = jnp.broadcast_to(grid_xy[None, :, :, None, :], (bs, nG, nG, nA, 2))

    anchors_arr = jnp.asarray(anchors, jnp.float32)
    pred_xy = (sig(dxdy) + grid_xy) * float(stride)
    pred_wh = jnp.exp(dwdh) * anchors_arr * float(stride)
    pred_bbox = jnp.concatenate([pred_xy, pred_wh, sig(conf), sig(prob)], axis=-1)
    return p, (pred_bbox if training else pred_bbox.reshape(-1, A))


if __name__ == "__main__":
    _ANCHORS = [[1.25, 1.625], [2.0, 3.75], [4.125, 2.875]]

    def _check(bs, nC, nA, nG, stride, dtype, seed, training):
        A = 5 + nC
        anchors = jnp.asarray(_ANCHORS[:nA], jnp.float32)
        key = jax.random.PRNGKey(seed)
        p_in = jax.random.normal(key, (bs, nA * A, nG, nG), jnp.float32).astype(dtype)

        p_perm, p_de = yolo_head_forward(p_in, anchors, stride, nC, training=training)
        p_perm = jax.block_until_ready(p_perm)
        p_de = jax.block_until_ready(p_de)

        ref_p, ref_de = _reference_forward(p_in, anchors, stride, nC, training=training)
        assert p_perm.shape == ref_p.shape, (p_perm.shape, ref_p.shape)
        assert p_de.shape == ref_de.shape, (p_de.shape, ref_de.shape)
        # Tolerance covers the approximate EUP reciprocal used for sigmoid.
        assert jnp.allclose(p_perm.astype(jnp.float32), ref_p.astype(jnp.float32),
                            rtol=2e-2, atol=2e-2)
        assert jnp.allclose(p_de, ref_de, rtol=2e-2, atol=2e-2)

    # 1) Toy lane-sparse head (C=27) -> cmaj kernel + XLA permute, eval mode.
    _check(bs=2, nC=4, nA=3, nG=16, stride=8.0, dtype=jnp.float32, seed=0,
           training=False)
    # 2) COCO-like head (C=255, ~lane-dense) -> fused perm-layout kernel,
    #    bf16 input, training mode (5-D decoded output).
    _check(bs=1, nC=80, nA=3, nG=8, stride=16.0, dtype=jnp.bfloat16, seed=0,
           training=True)
    # 3) Real YOLO grid size (nG=13 -> S=169, not 128-divisible): exercises the
    #    ceil-div ragged spatial tiling, eval mode.
    _check(bs=1, nC=2, nA=3, nG=13, stride=32.0, dtype=jnp.float32, seed=1,
           training=False)

    print("KERNEL_OK")
</pallas_src>

<mosaic_0001>
module attributes {stable_mosaic.version = 11 : i64} {
  func.func @_decode_cmaj_kernel(%arg0: i32, %arg1: i32, %arg2: memref<1x27x128xf32, #tpu.memory_space<vmem>>, %arg3: memref<1x27x128xf32, #tpu.memory_space<vmem>>) attributes {dimension_semantics = [#tpu.dimension_semantics<parallel>, #tpu.dimension_semantics<parallel>], iteration_bounds = array<i64: 2, 2>, scalar_prefetch = 0 : i64, scratch_operands = 0 : i64, tpu.core_type = #tpu.core_type<tc>, window_params = [{transform_indices = @transform_0, window_bounds = array<i64: 1, 27, 128>}, {transform_indices = @transform_1, window_bounds = array<i64: 1, 27, 128>}]} {
    %c128_i32 = arith.constant 128 : i32
    %0 = arith.muli %arg1, %c128_i32 : i32
    %1 = tpu.iota {dimensions = array<i32: 1>} : vector<2x128xi32>
    %2 = vector.broadcast %0 : i32 to vector<2x128xi32>
    %3 = arith.addi %1, %2 : vector<2x128xi32>
    %4 = arith.sitofp %3 : vector<2x128xi32> to vector<2x128xf32>
    %cst = arith.constant 5.000000e-01 : f32
    %5 = vector.broadcast %cst : f32 to vector<2x128xf32>
    %6 = arith.addf %4, %5 : vector<2x128xf32>
    %cst_0 = arith.constant 6.250000e-02 : f32
    %7 = vector.broadcast %cst_0 : f32 to vector<2x128xf32>
    %8 = arith.mulf %6, %7 : vector<2x128xf32>
    %9 = math.floor %8 : vector<2x128xf32>
    %cst_1 = arith.constant 1.600000e+01 : f32
    %10 = vector.broadcast %cst_1 : f32 to vector<2x128xf32>
    %11 = arith.mulf %10, %9 : vector<2x128xf32>
    %12 = arith.subf %4, %11 : vector<2x128xf32>
    %13 = tpu.iota {dimensions = array<i32: 0>} : vector<2x128xi32>
    %c0_i32 = arith.constant 0 : i32
    %14 = vector.broadcast %c0_i32 : i32 to vector<2x128xi32>
    %15 = arith.cmpi eq, %13, %14 : vector<2x128xi32>
    %16 = arith.select %15, %12, %9 : vector<2x128xi1>, vector<2x128xf32>
    %c0 = arith.constant 0 : index
    %c0_2 = arith.constant 0 : index
    %c0_3 = arith.constant 0 : index
    %17 = vector.load %arg2[%c0, %c0_2, %c0_3] : memref<1x27x128xf32, #tpu.memory_space<vmem>>, vector<1x2x128xf32>
    %18 = vector.shape_cast %17 : vector<1x2x128xf32> to vector<2x128xf32>
    %c0_4 = arith.constant 0 : index
    %c2 = arith.constant 2 : index
    %c0_5 = arith.constant 0 : index
    %19 = vector.load %arg2[%c0_4, %c2, %c0_5] : memref<1x27x128xf32, #tpu.memory_space<vmem>>, vector<1x2x128xf32>
    %20 = vector.shape_cast %19 : vector<1x2x128xf32> to vector<2x128xf32>
    %c0_6 = arith.constant 0 : index
    %c4 = arith.constant 4 : index
    %c0_7 = arith.constant 0 : index
    %21 = vector.load %arg2[%c0_6, %c4, %c0_7] : memref<1x27x128xf32, #tpu.memory_space<vmem>>, vector<1x5x128xf32>
    %22 = vector.shape_cast %21 : vector<1x5x128xf32> to vector<5x128xf32>
    %cst_8 = arith.constant 0.000000e+00 : f32
    %23 = vector.broadcast %cst_8 : f32 to vector<2x128xf32>
    %24 = arith.subf %23, %18 : vector<2x128xf32>
    %25 = math.exp %24 : vector<2x128xf32>
    %cst_9 = arith.constant 1.000000e+00 : f32
    %26 = vector.broadcast %cst_9 : f32 to vector<2x128xf32>
    %27 = arith.addf %26, %25 : vector<2x128xf32>
    %28 = tpu.reciprocal %27 {approx = true} : vector<2x128xf32> -> vector<2x128xf32>
    %cst_10 = arith.constant 0.000000e+00 : f32
    %29 = vector.broadcast %cst_10 : f32 to vector<5x128xf32>
    %30 = arith.subf %29, %22 : vector<5x128xf32>
    %31 = math.exp %30 : vector<5x128xf32>
    %cst_11 = arith.constant 1.000000e+00 : f32
    %32 = vector.broadcast %cst_11 : f32 to vector<5x128xf32>
    %33 = arith.addf %32, %31 : vector<5x128xf32>
    %34 = tpu.reciprocal %33 {approx = true} : vector<5x128xf32> -> vector<5x128xf32>
    %35 = math.exp %20 : vector<2x128xf32>
    %36 = arith.addf %28, %16 : vector<2x128xf32>
    %cst_12 = arith.constant 8.000000e+00 : f32
    %37 = vector.broadcast %cst_12 : f32 to vector<2x128xf32>
    %38 = arith.mulf %36, %37 : vector<2x128xf32>
    %c0_13 = arith.constant 0 : index
    %c0_14 = arith.constant 0 : index
    %c0_15 = arith.constant 0 : index
    %39 = vector.load %arg3[%c0_13, %c0_14, %c0_15] : memref<1x27x128xf32, #tpu.memory_space<vmem>>, vector<1x2x128xf32>
    %40 = vector.shape_cast %39 : vector<1x2x128xf32> to vector<2x128xf32>
    %41 = vector.shape_cast %38 : vector<2x128xf32> to vector<1x2x128xf32>
    tpu.vector_store %arg3[%c0_13, %c0_14, %c0_15], %41 {strides = array<i32>} : memref<1x27x128xf32, #tpu.memory_space<vmem>>, vector<1x2x128xf32>,
    %42 = vector.extract_strided_slice %35 {offsets = [0, 0], sizes = [1, 128], strides = [1, 1]} : vector<2x128xf32> to vector<1x128xf32>
    %cst_16 = arith.constant 1.000000e+01 : f32
    %43 = vector.broadcast %cst_16 : f32 to vector<1x128xf32>
    %44 = arith.mulf %42, %43 : vector<1x128xf32>
    %c0_17 = arith.constant 0 : index
    %c2_18 = arith.constant 2 : index
    %c0_19 = arith.constant 0 : index
    %45 = vector.load %arg3[%c0_17, %c2_18, %c0_19] : memref<1x27x128xf32, #tpu.memory_space<vmem>>, vector<1x1x128xf32>
    %46 = vector.shape_cast %45 : vector<1x1x128xf32> to vector<1x128xf32>
    %47 = vector.shape_cast %44 : vector<1x128xf32> to vector<1x1x128xf32>
    tpu.vector_store %arg3[%c0_17, %c2_18, %c0_19], %47 {strides = array<i32>} : memref<1x27x128xf32, #tpu.memory_space<vmem>>, vector<1x1x128xf32>,
    %48 = vector.extract_strided_slice %35 {offsets = [1, 0], sizes = [1, 128], strides = [1, 1]} : vector<2x128xf32> to vector<1x128xf32>
    %cst_20 = arith.constant 1.300000e+01 : f32
    %49 = vector.broadcast %cst_20 : f32 to vector<1x128xf32>
    %50 = arith.mulf %48, %49 : vector<1x128xf32>
    %c0_21 = arith.constant 0 : index
    %c3 = arith.constant 3 : index
    %c0_22 = arith.constant 0 : index
    %51 = vector.load %arg3[%c0_21, %c3, %c0_22] : memref<1x27x128xf32, #tpu.memory_space<vmem>>, vector<1x1x128xf32>
    %52 = vector.shape_cast %51 : vector<1x1x128xf32> to vector<1x128xf32>
    %53 = vector.shape_cast %50 : vector<1x128xf32> to vector<1x1x128xf32>
    tpu.vector_store %arg3[%c0_21, %c3, %c0_22], %53 {strides = array<i32>} : memref<1x27x128xf32, #tpu.memory_space<vmem>>, vector<1x1x128xf32>,
    %c0_23 = arith.constant 0 : index
    %c4_24 = arith.constant 4 : index
    %c0_25 = arith.constant 0 : index
    %54 = vector.load %arg3[%c0_23, %c4_24, %c0_25] : memref<1x27x128xf32, #tpu.memory_space<vmem>>, vector<1x5x128xf32>
    %55 = vector.shape_cast %54 : vector<1x5x128xf32> to vector<5x128xf32>
    %56 = vector.shape_cast %34 : vector<5x128xf32> to vector<1x5x128xf32>
    tpu.vector_store %arg3[%c0_23, %c4_24, %c0_25], %56 {strides = array<i32>} : memref<1x27x128xf32, #tpu.memory_space<vmem>>, vector<1x5x128xf32>,
    %c0_26 = arith.constant 0 : index
    %c9 = arith.constant 9 : index
    %c0_27 = arith.constant 0 : index
    %57 = vector.load %arg2[%c0_26, %c9, %c0_27] : memref<1x27x128xf32, #tpu.memory_space<vmem>>, vector<1x2x128xf32>
    %58 = vector.shape_cast %57 : vector<1x2x128xf32> to vector<2x128xf32>
    %c0_28 = arith.constant 0 : index
    %c11 = arith.constant 11 : index
    %c0_29 = arith.constant 0 : index
    %59 = vector.load %arg2[%c0_28, %c11, %c0_29] : memref<1x27x128xf32, #tpu.memory_space<vmem>>, vector<1x2x128xf32>
    %60 = vector.shape_cast %59 : vector<1x2x128xf32> to vector<2x128xf32>
    %c0_30 = arith.constant 0 : index
    %c13 = arith.constant 13 : index
    %c0_31 = arith.constant 0 : index
    %61 = vector.load %arg2[%c0_30, %c13, %c0_31] : memref<1x27x128xf32, #tpu.memory_space<vmem>>, vector<1x5x128xf32>
    %62 = vector.shape_cast %61 : vector<1x5x128xf32> to vector<5x128xf32>
    %cst_32 = arith.constant 0.000000e+00 : f32
    %63 = vector.broadcast %cst_32 : f32 to vector<2x128xf32>
    %64 = arith.subf %63, %58 : vector<2x128xf32>
    %65 = math.exp %64 : vector<2x128xf32>
    %cst_33 = arith.constant 1.000000e+00 : f32
    %66 = vector.broadcast %cst_33 : f32 to vector<2x128xf32>
    %67 = arith.addf %66, %65 : vector<2x128xf32>
    %68 = tpu.reciprocal %67 {approx = true} : vector<2x128xf32> -> vector<2x128xf32>
    %cst_34 = arith.constant 0.000000e+00 : f32
    %69 = vector.broadcast %cst_34 : f32 to vector<5x128xf32>
    %70 = arith.subf %69, %62 : vector<5x128xf32>
    %71 = math.exp %70 : vector<5x128xf32>
    %cst_35 = arith.constant 1.000000e+00 : f32
    %72 = vector.broadcast %cst_35 : f32 to vector<5x128xf32>
    %73 = arith.addf %72, %71 : vector<5x128xf32>
    %74 = tpu.reciprocal %73 {approx = true} : vector<5x128xf32> -> vector<5x128xf32>
    %75 = math.exp %60 : vector<2x128xf32>
    %76 = arith.addf %68, %16 : vector<2x128xf32>
    %cst_36 = arith.constant 8.000000e+00 : f32
    %77 = vector.broadcast %cst_36 : f32 to vector<2x128xf32>
    %78 = arith.mulf %76, %77 : vector<2x128xf32>
    %c0_37 = arith.constant 0 : index
    %c9_38 = arith.constant 9 : index
    %c0_39 = arith.constant 0 : index
    %79 = vector.load %arg3[%c0_37, %c9_38, %c0_39] : memref<1x27x128xf32, #tpu.memory_space<vmem>>, vector<1x2x128xf32>
    %80 = vector.shape_cast %79 : vector<1x2x128xf32> to vector<2x128xf32>
    %81 = vector.shape_cast %78 : vector<2x128xf32> to vector<1x2x128xf32>
    tpu.vector_store %arg3[%c0_37, %c9_38, %c0_39], %81 {strides = array<i32>} : memref<1x27x128xf32, #tpu.memory_space<vmem>>, vector<1x2x128xf32>,
    %82 = vector.extract_strided_slice %75 {offsets = [0, 0], sizes = [1, 128], strides = [1, 1]} : vector<2x128xf32> to vector<1x128xf32>
    %cst_40 = arith.constant 1.600000e+01 : f32
    %83 = vector.broadcast %cst_40 : f32 to vector<1x128xf32>
    %84 = arith.mulf %82, %83 : vector<1x128xf32>
    %c0_41 = arith.constant 0 : index
    %c11_42 = arith.constant 11 : index
    %c0_43 = arith.constant 0 : index
    %85 = vector.load %arg3[%c0_41, %c11_42, %c0_43] : memref<1x27x128xf32, #tpu.memory_space<vmem>>, vector<1x1x128xf32>
    %86 = vector.shape_cast %85 : vector<1x1x128xf32> to vector<1x128xf32>
    %87 = vector.shape_cast %84 : vector<1x128xf32> to vector<1x1x128xf32>
    tpu.vector_store %arg3[%c0_41, %c11_42, %c0_43], %87 {strides = array<i32>} : memref<1x27x128xf32, #tpu.memory_space<vmem>>, vector<1x1x128xf32>,
    %88 = vector.extract_strided_slice %75 {offsets = [1, 0], sizes = [1, 128], strides = [1, 1]} : vector<2x128xf32> to vector<1x128xf32>
    %cst_44 = arith.constant 3.000000e+01 : f32
    %89 = vector.broadcast %cst_44 : f32 to vector<1x128xf32>
    %90 = arith.mulf %88, %89 : vector<1x128xf32>
    %c0_45 = arith.constant 0 : index
    %c12 = arith.constant 12 : index
    %c0_46 = arith.constant 0 : index
    %91 = vector.load %arg3[%c0_45, %c12, %c0_46] : memref<1x27x128xf32, #tpu.memory_space<vmem>>, vector<1x1x128xf32>
    %92 = vector.shape_cast %91 : vector<1x1x128xf32> to vector<1x128xf32>
    %93 = vector.shape_cast %90 : vector<1x128xf32> to vector<1x1x128xf32>
    tpu.vector_store %arg3[%c0_45, %c12, %c0_46], %93 {strides = array<i32>} : memref<1x27x128xf32, #tpu.memory_space<vmem>>, vector<1x1x128xf32>,
    %c0_47 = arith.constant 0 : index
    %c13_48 = arith.constant 13 : index
    %c0_49 = arith.constant 0 : index
    %94 = vector.load %arg3[%c0_47, %c13_48, %c0_49] : memref<1x27x128xf32, #tpu.memory_space<vmem>>, vector<1x5x128xf32>
    %95 = vector.shape_cast %94 : vector<1x5x128xf32> to vector<5x128xf32>
    %96 = vector.shape_cast %74 : vector<5x128xf32> to vector<1x5x128xf32>
    tpu.vector_store %arg3[%c0_47, %c13_48, %c0_49], %96 {strides = array<i32>} : memref<1x27x128xf32, #tpu.memory_space<vmem>>, vector<1x5x128xf32>,
    %c0_50 = arith.constant 0 : index
    %c18 = arith.constant 18 : index
    %c0_51 = arith.constant 0 : index
    %97 = vector.load %arg2[%c0_50, %c18, %c0_51] : memref<1x27x128xf32, #tpu.memory_space<vmem>>, vector<1x2x128xf32>
    %98 = vector.shape_cast %97 : vector<1x2x128xf32> to vector<2x128xf32>
    %c0_52 = arith.constant 0 : index
    %c20 = arith.constant 20 : index
    %c0_53 = arith.constant 0 : index
    %99 = vector.load %arg2[%c0_52, %c20, %c0_53] : memref<1x27x128xf32, #tpu.memory_space<vmem>>, vector<1x2x128xf32>
    %100 = vector.shape_cast %99 : vector<1x2x128xf32> to vector<2x128xf32>
    %c0_54 = arith.constant 0 : index
    %c22 = arith.constant 22 : index
    %c0_55 = arith.constant 0 : index
    %101 = vector.load %arg2[%c0_54, %c22, %c0_55] : memref<1x27x128xf32, #tpu.memory_space<vmem>>, vector<1x5x128xf32>
    %102 = vector.shape_cast %101 : vector<1x5x128xf32> to vector<5x128xf32>
    %cst_56 = arith.constant 0.000000e+00 : f32
    %103 = vector.broadcast %cst_56 : f32 to vector<2x128xf32>
    %104 = arith.subf %103, %98 : vector<2x128xf32>
    %105 = math.exp %104 : vector<2x128xf32>
    %cst_57 = arith.constant 1.000000e+00 : f32
    %106 = vector.broadcast %cst_57 : f32 to vector<2x128xf32>
    %107 = arith.addf %106, %105 : vector<2x128xf32>
    %108 = tpu.reciprocal %107 {approx = true} : vector<2x128xf32> -> vector<2x128xf32>
    %cst_58 = arith.constant 0.000000e+00 : f32
    %109 = vector.broadcast %cst_58 : f32 to vector<5x128xf32>
    %110 = arith.subf %109, %102 : vector<5x128xf32>
    %111 = math.exp %110 : vector<5x128xf32>
    %cst_59 = arith.constant 1.000000e+00 : f32
    %112 = vector.broadcast %cst_59 : f32 to vector<5x128xf32>
    %113 = arith.addf %112, %111 : vector<5x128xf32>
    %114 = tpu.reciprocal %113 {approx = true} : vector<5x128xf32> -> vector<5x128xf32>
    %115 = math.exp %100 : vector<2x128xf32>
    %116 = arith.addf %108, %16 : vector<2x128xf32>
    %cst_60 = arith.constant 8.000000e+00 : f32
    %117 = vector.broadcast %cst_60 : f32 to vector<2x128xf32>
    %118 = arith.mulf %116, %117 : vector<2x128xf32>
    %c0_61 = arith.constant 0 : index
    %c18_62 = arith.constant 18 : index
    %c0_63 = arith.constant 0 : index
    %119 = vector.load %arg3[%c0_61, %c18_62, %c0_63] : memref<1x27x128xf32, #tpu.memory_space<vmem>>, vector<1x2x128xf32>
    %120 = vector.shape_cast %119 : vector<1x2x128xf32> to vector<2x128xf32>
    %121 = vector.shape_cast %118 : vector<2x128xf32> to vector<1x2x128xf32>
    tpu.vector_store %arg3[%c0_61, %c18_62, %c0_63], %121 {strides = array<i32>} : memref<1x27x128xf32, #tpu.memory_space<vmem>>, vector<1x2x128xf32>,
    %122 = vector.extract_strided_slice %115 {offsets = [0, 0], sizes = [1, 128], strides = [1, 1]} : vector<2x128xf32> to vector<1x128xf32>
    %cst_64 = arith.constant 3.300000e+01 : f32
    %123 = vector.broadcast %cst_64 : f32 to vector<1x128xf32>
    %124 = arith.mulf %122, %123 : vector<1x128xf32>
    %c0_65 = arith.constant 0 : index
    %c20_66 = arith.constant 20 : index
    %c0_67 = arith.constant 0 : index
    %125 = vector.load %arg3[%c0_65, %c20_66, %c0_67] : memref<1x27x128xf32, #tpu.memory_space<vmem>>, vector<1x1x128xf32>
    %126 = vector.shape_cast %125 : vector<1x1x128xf32> to vector<1x128xf32>
    %127 = vector.shape_cast %124 : vector<1x128xf32> to vector<1x1x128xf32>
    tpu.vector_store %arg3[%c0_65, %c20_66, %c0_67], %127 {strides = array<i32>} : memref<1x27x128xf32, #tpu.memory_space<vmem>>, vector<1x1x128xf32>,
    %128 = vector.extract_strided_slice %115 {offsets = [1, 0], sizes = [1, 128], strides = [1, 1]} : vector<2x128xf32> to vector<1x128xf32>
    %cst_68 = arith.constant 2.300000e+01 : f32
    %129 = vector.broadcast %cst_68 : f32 to vector<1x128xf32>
    %130 = arith.mulf %128, %129 : vector<1x128xf32>
    %c0_69 = arith.constant 0 : index
    %c21 = arith.constant 21 : index
    %c0_70 = arith.constant 0 : index
    %131 = vector.load %arg3[%c0_69, %c21, %c0_70] : memref<1x27x128xf32, #tpu.memory_space<vmem>>, vector<1x1x128xf32>
    %132 = vector.shape_cast %131 : vector<1x1x128xf32> to vector<1x128xf32>
    %133 = vector.shape_cast %130 : vector<1x128xf32> to vector<1x1x128xf32>
    tpu.vector_store %arg3[%c0_69, %c21, %c0_70], %133 {strides = array<i32>} : memref<1x27x128xf32, #tpu.memory_space<vmem>>, vector<1x1x128xf32>,
    %c0_71 = arith.constant 0 : index
    %c22_72 = arith.constant 22 : index
    %c0_73 = arith.constant 0 : index
    %134 = vector.load %arg3[%c0_71, %c22_72, %c0_73] : memref<1x27x128xf32, #tpu.memory_space<vmem>>, vector<1x5x128xf32>
    %135 = vector.shape_cast %134 : vector<1x5x128xf32> to vector<5x128xf32>
    %136 = vector.shape_cast %114 : vector<5x128xf32> to vector<1x5x128xf32>
    tpu.vector_store %arg3[%c0_71, %c22_72, %c0_73], %136 {strides = array<i32>} : memref<1x27x128xf32, #tpu.memory_space<vmem>>, vector<1x5x128xf32>,
    return
  }
  func.func @transform_0(%arg0: i32, %arg1: i32) -> (i32, i32, i32) {
    %c0_i32 = arith.constant 0 : i32
    %c0_i32_0 = arith.constant 0 : i32
    return %arg0, %c0_i32, %arg1 : i32, i32, i32
  }
  func.func @transform_1(%arg0: i32, %arg1: i32) -> (i32, i32, i32) {
    %c0_i32 = arith.constant 0 : i32
    %c0_i32_0 = arith.constant 0 : i32
    return %arg0, %c0_i32, %arg1 : i32, i32, i32
  }
}

</mosaic_0001>

<llo_original>
// kernel: tpu_custom_call.1
$region0: #{tpu_custom_call.1}
  #allocation0 [shape = 'u32[]', space=smem, size = 0x4, offset = 0x4, fixed_abs, tag = 'smem constant byte address 0x4 - core index']
  #allocation1 [shape = 'u32[144,128]{1,0:T(1,128)}', space=vmem, size = 0x12000, scoped, tag = 'internal scratch']
  %s0 = inlined_call_operand.vmem [shape: f32[2,27,256], index: 0, kind: input, shape index: {}]
  %s1 = inlined_call_operand.vmem [shape: f32[2,27,256], index: 1, kind: output, shape index: {}]
  %s2 = sld [smem:[#allocation0]]
  $region109: #{tpu_custom_call.1} parent=0
    _
  %s4 = ssub.s32 1, %s2
  %s5 = scalar_select 0, %s4, %s2
  $region1: #{tpu_custom_call.1} parent=0
    #allocation2 [shape = 'u8[32768]{0}', space=vmem, size = 0x8000, scoped, tag = 'input window, operand 0']
    #allocation3 [shape = 'u8[32768]{0}', space=vmem, size = 0x8000, scoped, tag = 'output window, operand 0']
    loop: start=0, step=1, limit=6
    $region2: #{tpu_custom_call.1} parent=1 // loop_pre_header
      _
    $region3: #{tpu_custom_call.1} parent=1 // loop_header
      %s7 = sphi 0, %s11
      %p8 = scmp.ge.s32.totalorder %s7, 6
      %s14 = sphi 0, %s26
      %s15 = sphi 0, %s22
      %s16 = sphi 0, %s14
      %s17 = sphi 0, %s15
      %s18 = sphi 0, %s16
      %s19 = sphi 0, %s17
      %s31 = sphi 0, %s33
      %s34 = sphi 0, %s31
      %s35 = sphi 0, %s34
      %s51 = sphi 0, %s35
      %s59 = sphi 0, %s61
      %s62 = sphi 0, %s59
      %s63 = sphi 0, %s62
      %s79 = sphi 0, %s63
    $region4: #{tpu_custom_call.1} parent=1 // loop_header_branch
      %10 = sbr.rel (%p8) target = $region8
    $region5: #{tpu_custom_call.1} parent=1 // loop_body
      %s12 = ssub.s32 %s7, 1
      %s13 = ssub.s32 %s7, 2
      %s20 = sadd.s32 1, %s15
      %p21 = scmp.ge.s32.totalorder %s20, 2
      %s22 = scalar_select %p21, 0, %s20
      %s23 = sadd.s32 1, %s14
      %s24 = scalar_select %p21, %s23, %s14
      %p25 = scmp.ge.s32.totalorder %s24, 2
      %s26 = scalar_select %p25, 0, %s24
      %s27 = ssub.s32 %s14, %s26
      %s28 = ssub.s32 %s15, %s22
      %s29 = sor.u32 %s27, %s28
      %p30 = scmp.eq.s32.totalorder %s29, 0
      %s32 = sadd.s32 %s31, 1
      %s33 = scalar_select %p30, %s31, %s32
      %p36 = pneg %p30
      %p37 = scmp.eq.s32.totalorder %s7, 3
      %p38 = por %p36, %p37
      %p39 = scmp.ne.s32.totalorder %s31, %s34
      %p40 = scmp.eq.s32.totalorder %s7, 0
      %p41 = por %p39, %p40
      %p42 = scmp.ne.s32.totalorder %s31, %s34
      %p43 = scmp.eq.s32.totalorder %s12, 3
      %p44 = por %p42, %p43
      %p45 = scmp.ne.s32.totalorder %s34, %s35
      %p46 = scmp.eq.s32.totalorder %s12, 0
      %p47 = por %p45, %p46
      %p48 = scmp.ne.s32.totalorder %s34, %s35
      %p49 = scmp.eq.s32.totalorder %s13, 3
      %p50 = por %p48, %p49
      %p52 = scmp.ne.s32.totalorder %s35, %s51
      %p53 = scmp.eq.s32.totalorder %s13, 0
      %p54 = por %p52, %p53
      %s55 = ssub.s32 %s14, %s26
      %s56 = ssub.s32 %s15, %s22
      %s57 = sor.u32 %s55, %s56
      %p58 = scmp.eq.s32.totalorder %s57, 0
      %s60 = sadd.s32 %s59, 1
      %s61 = scalar_select %p58, %s59, %s60
      %p64 = pneg %p58
      %p65 = scmp.eq.s32.totalorder %s7, 3
      %p66 = por %p64, %p65
      %p67 = scmp.ne.s32.totalorder %s59, %s62
      %p68 = scmp.eq.s32.totalorder %s7, 0
      %p69 = por %p67, %p68
      %p70 = scmp.ne.s32.totalorder %s59, %s62
      %p71 = scmp.eq.s32.totalorder %s12, 3
      %p72 = por %p70, %p71
      %p73 = scmp.ne.s32.totalorder %s62, %s63
      %p74 = scmp.eq.s32.totalorder %s12, 0
      %p75 = por %p73, %p74
      %p76 = scmp.ne.s32.totalorder %s62, %s63
      %p77 = scmp.eq.s32.totalorder %s13, 3
      %p78 = por %p76, %p77
      %p80 = scmp.ne.s32.totalorder %s63, %s79
      %p81 = scmp.eq.s32.totalorder %s13, 0
      %p82 = por %p80, %p81
      %p83 = scmp.le.s32.totalorder 1, %s7
      %p84 = scmp.lt.s32.totalorder %s7, 5
      %p85 = pnand %p83, %p84
      %p86 = pneg %p85
      // Predicated region
      $region9: #{tpu_custom_call.1} parent=5 // pred_check
        _
      $region10: #{tpu_custom_call.1} parent=5 // pred_check_branch
        %88 = sbr.rel (%p85) target = $region12
      $region11: #{tpu_custom_call.1} parent=5 // pred_region
        %s89 = ssub.s32 %s7, 1
      $region12: #{tpu_custom_call.1} parent=5 // pred_fallthru
        _
      %p90 = scmp.lt.s32.totalorder %s7, 4
      // Predicated region
      $region13: #{tpu_custom_call.1} parent=5 // pred_check
        %p91 = pneg %p90
      $region14: #{tpu_custom_call.1} parent=5 // pred_check_branch
        %93 = sbr.rel (%p91) target = $region16
      $region15: #{tpu_custom_call.1} parent=5 // pred_region
        // Predicated region
        $region17: #{tpu_custom_call.1} parent=15 // pred_check
          %p94 = pneg %p41
        $region18: #{tpu_custom_call.1} parent=15 // pred_check_branch
          %96 = sbr.rel (%p94) target = $region20
        $region19: #{tpu_custom_call.1} parent=15 // pred_region
          %s97 = sand.u32 %s31, 1
          %s98 = sand.u32 %s31, 1
          %s99 = smul.addr %s98, 32
          %s100 = scalar_lea.vmem [#allocation2], %s99
          %s101 = smul.addr %s14, 8
          %s102 = sadd.s32 %s15, %s101
          %s103 = smul.addr %s102, 8
          %s104 = scalar_lea.vmem %s0, %s103
          // Predicated region
          $region21: #{tpu_custom_call.1} parent=19 // pred_check
            _
          $region22: #{tpu_custom_call.1} parent=19 // pred_check_branch
            %106 = sbr.rel (0) target = $region24
          $region23: #{tpu_custom_call.1} parent=19 // pred_region
            // Predicated region
            $region25: #{tpu_custom_call.1} parent=23 // pred_check
              _
            $region26: #{tpu_custom_call.1} parent=23 // pred_check_branch
              %108 = sbr.rel (0) target = $region28
            $region27: #{tpu_custom_call.1} parent=23 // pred_region
              // Predicated region
              $region40: #{tpu_custom_call.1} parent=27 // pred_check
                _
              $region41: #{tpu_custom_call.1} parent=27 // pred_check_branch
                %129 = sbr.rel (0) target = $region43
              $region42: #{tpu_custom_call.1} parent=27 // pred_region
                loop: start=0, step=1, limit=1
                $region44: #{tpu_custom_call.1} parent=42 // loop_pre_header
                  _
                $region45: #{tpu_custom_call.1} parent=42 // loop_header
                  %s131 = sphi 0, %s135
                  %p132 = scmp.ge.s32.totalorder %s131, 1
                  %s136 = sphi %s104, %s104
                  %s137 = sphi %s100, %s100
                $region46: #{tpu_custom_call.1} parent=42 // loop_header_branch
                  %134 = sbr.rel (%p132) target = $region50
                $region47: #{tpu_custom_call.1} parent=42 // loop_body
                  %v138 = vld [vmem:[%s136] sm:$0xff]
                  %139 = vst [vmem:[%s137] sm:$0xff] %v138
                  %v140 = vld [vmem:[%s136 + $0x10] sm:$0xff]
                  %141 = vst [vmem:[%s137 + $0x8] sm:$0xff] %v140
                  %v142 = vld [vmem:[%s136 + $0x20] sm:$0xff]
                  %143 = vst [vmem:[%s137 + $0x10] sm:$0xff] %v142
                  %v144 = vld [vmem:[%s136 + $0x30] sm:$0xff]
                  %145 = vst [vmem:[%s137 + $0x18] sm:$0xff] %v144
                $region48: #{tpu_custom_call.1} parent=42 // loop_footer
                  %s135 = sadd.s32 1, %s131
                $region49: #{tpu_custom_call.1} parent=42 // loop_footer_branch
                  %130 = sbr.rel target = $region45
                $region50: #{tpu_custom_call.1} parent=42 // loop_exit
                  _
              $region43: #{tpu_custom_call.1} parent=27 // pred_fallthru
                _
              // Predicated region
              $region51: #{tpu_custom_call.1} parent=27 // pred_check
                _
              $region52: #{tpu_custom_call.1} parent=27 // pred_check_branch
                %147 = sbr.rel target = $region54
              $region53: #{tpu_custom_call.1} parent=27 // pred_region
                _
              $region54: #{tpu_custom_call.1} parent=27 // pred_fallthru
                _
            $region28: #{tpu_custom_call.1} parent=23 // pred_fallthru
              _
            // Predicated region
            $region29: #{tpu_custom_call.1} parent=23 // pred_check
              _
            $region30: #{tpu_custom_call.1} parent=23 // pred_check_branch
              %110 = sbr.rel target = $region32
            $region31: #{tpu_custom_call.1} parent=23 // pred_region
              loop: start=0, step=1, limit=1
              $region33: #{tpu_custom_call.1} parent=31 // loop_pre_header
                _
              $region34: #{tpu_custom_call.1} parent=31 // loop_header
                %s113 = sphi 0, %s117
                %p114 = scmp.ge.s32.totalorder %s113, 1
                %s118 = sphi %s104, %s104
                %s119 = sphi %s100, %s100
              $region35: #{tpu_custom_call.1} parent=31 // loop_header_branch
                %116 = sbr.rel (%p114) target = $region39
              $region36: #{tpu_custom_call.1} parent=31 // loop_body
                %v120 = vld [vmem:[%s118] sm:$0xff]
                %121 = vst [vmem:[%s119] sm:$0xff] %v120
                %v122 = vld [vmem:[%s118 + $0x10] sm:$0xff]
                %123 = vst [vmem:[%s119 + $0x8] sm:$0xff] %v122
                %v124 = vld [vmem:[%s118 + $0x20] sm:$0xff]
                %125 = vst [vmem:[%s119 + $0x10] sm:$0xff] %v124
                %v126 = vld [vmem:[%s118 + $0x30] sm:$0xff]
                %127 = vst [vmem:[%s119 + $0x18] sm:$0xff] %v126
              $region37: #{tpu_custom_call.1} parent=31 // loop_footer
                %s117 = sadd.s32 1, %s113
              $region38: #{tpu_custom_call.1} parent=31 // loop_footer_branch
                %112 = sbr.rel target = $region34
              $region39: #{tpu_custom_call.1} parent=31 // loop_exit
                _
            $region32: #{tpu_custom_call.1} parent=23 // pred_fallthru
              _
          $region24: #{tpu_custom_call.1} parent=19 // pred_fallthru
            _
          %148 = vnop
        $region20: #{tpu_custom_call.1} parent=15 // pred_fallthru
          _
      $region16: #{tpu_custom_call.1} parent=5 // pred_fallthru
        _
      %p149 = scmp.le.s32.totalorder 1, %s7
      %p150 = scmp.lt.s32.totalorder %s7, 5
      %p151 = pnand %p149, %p150
      %p152 = pneg %p151
      // Predicated region
      $region55: #{tpu_custom_call.1} parent=5 // pred_check
        _
      $region56: #{tpu_custom_call.1} parent=5 // pred_check_branch
        %154 = sbr.rel (%p151) target = $region58
      $region57: #{tpu_custom_call.1} parent=5 // pred_region
        %s155 = ssub.s32 %s7, 1
        %s156 = sand.u32 %s34, 1
        %s157 = sand.u32 %s34, 1
        %s158 = smul.addr %s157, 32
        %s159 = scalar_lea.vmem [#allocation2], %s158
        // Predicated region
        $region59: #{tpu_custom_call.1} parent=57 // pred_check
          %p160 = pneg %p47
        $region60: #{tpu_custom_call.1} parent=57 // pred_check_branch
          %162 = sbr.rel (%p160) target = $region62
        $region61: #{tpu_custom_call.1} parent=57 // pred_region
          _
        $region62: #{tpu_custom_call.1} parent=57 // pred_fallthru
          _
        %s163 = sand.u32 %s34, 1
        %s164 = sand.u32 %s34, 1
        %s165 = smul.addr %s164, 32
        %s166 = scalar_lea.vmem [#allocation2], %s165
        %p167 = pneg %p47
        %p168 = pneg %p44
        %p169 = pneg %p75
        %p170 = pneg %p72
        %s171 = sand.u32 %s62, 1
        %s172 = sand.u32 %s62, 1
        %s173 = smul.addr %s172, 32
        %s174 = scalar_lea.vmem [#allocation3], %s173
        %s175 = smul.u32 %s17, 128
        %v176 = vlaneseq
        %v177 = vand.u32 %v176, 127
        %v178 = vstv %s175
        %v179 = vadd.s32 %v177, %v178
        %v180 = vcvt.s32.f32 %v179
        %v181 = vadd.f32 %v180, 0.5
        %v182 = vmul.f32 %v181, 0.0625
        %v183 = vfloor.f32 %v182
        %v184 = vmul.f32 %v183, 16.0
        %v185 = vsub.f32 %v180, %v184
        %v186 = vlaneseq
        %v187 = vshrl.u32 %v186, 7
        %vm188 = vcmp.eq.s32.totalorder %v187, 0
        %v189 = vsel %vm188, %v185, %v183
        %v190 = vld [vmem:[%s159] sm:$0x3]
        %v191 = vld [vmem:[%s159 + $0x2] sm:$0x3]
        %v192 = vld [vmem:[%s159 + $0x4] sm:$0x1f]
        %v193 = vsub.f32 0.0, %v190
        %v194 = vmul.f32 %v193, 1.442695
        %v195 = vpow.pop %v194
        %v196 = vadd.f32 %v195, 1.0
        %v197 = vrcp.pop %v196
        %v198 = vsub.f32 0.0, %v192
        %v199 = vmul.f32 %v198, 1.442695
        %v200 = vpow.pop %v199
        %v201 = vadd.f32 %v200, 1.0
        %v202 = vrcp.pop %v201
        %v203 = vmul.f32 %v191, 1.442695
        %v204 = vpow.pop %v203
        %v205 = vadd.f32 %v197, %v189
        %v206 = vmul.f32 %v205, 8.0
        %207 = vst [vmem:[%s174] sm:$0x3] %v206
        %v208 = vmul.f32 %v204, 10.0
        %209 = vst [vmem:[%s174 + $0x2] sm:$0x1] %v208
        %v210 = vmul.f32 %v204, 13.0
        %211 = vst [vmem:[%s174 + $0x2] sm:$0x2] %v210
        %212 = vst [vmem:[%s174 + $0x4] sm:$0x1f] %v202
        %v213 = vld [vmem:[%s159 + $0x9] sm:$0x3]
        %v214 = vld [vmem:[%s159 + $0xb] sm:$0x3]
        %v215 = vld [vmem:[%s159 + $0xd] sm:$0x1f]
        %v216 = vsub.f32 0.0, %v213
        %v217 = vmul.f32 %v216, 1.442695
        %v218 = vpow.pop %v217
        %v219 = vadd.f32 %v218, 1.0
        %v220 = vrcp.pop %v219
        %v221 = vsub.f32 0.0, %v215
        %v222 = vmul.f32 %v221, 1.442695
        %v223 = vpow.pop %v222
        %v224 = vadd.f32 %v223, 1.0
        %v225 = vrcp.pop %v224
        %v226 = vmul.f32 %v214, 1.442695
        %v227 = vpow.pop %v226
        %v228 = vadd.f32 %v220, %v189
        %v229 = vmul.f32 %v228, 8.0
        %230 = vst [vmem:[%s174 + $0x9] sm:$0x3] %v229
        %v231 = vmul.f32 %v227, 16.0
        %232 = vst [vmem:[%s174 + $0xb] sm:$0x1] %v231
        %v233 = vmul.f32 %v227, 30.0
        %234 = vst [vmem:[%s174 + $0xb] sm:$0x2] %v233
        %235 = vst [vmem:[%s174 + $0xd] sm:$0x1f] %v225
        %v236 = vld [vmem:[%s159 + $0x12] sm:$0x3]
        %v237 = vld [vmem:[%s159 + $0x14] sm:$0x3]
        %v238 = vld [vmem:[%s159 + $0x16] sm:$0x1f]
        %v239 = vsub.f32 0.0, %v236
        %v240 = vmul.f32 %v239, 1.442695
        %v241 = vpow.pop %v240
        %v242 = vadd.f32 %v241, 1.0
        %v243 = vrcp.pop %v242
        %v244 = vsub.f32 0.0, %v238
        %v245 = vmul.f32 %v244, 1.442695
        %v246 = vpow.pop %v245
        %v247 = vadd.f32 %v246, 1.0
        %v248 = vrcp.pop %v247
        %v249 = vmul.f32 %v237, 1.442695
        %v250 = vpow.pop %v249
        %v251 = vadd.f32 %v243, %v189
        %v252 = vmul.f32 %v251, 8.0
        %253 = vst [vmem:[%s174 + $0x12] sm:$0x3] %v252
        %v254 = vmul.f32 %v250, 33.0
        %255 = vst [vmem:[%s174 + $0x14] sm:$0x1] %v254
        %v256 = vmul.f32 %v250, 23.0
        %257 = vst [vmem:[%s174 + $0x14] sm:$0x2] %v256
        %258 = vst [vmem:[%s174 + $0x16] sm:$0x1f] %v248
        %s259 = sand.u32 %s62, 1
        %s260 = sand.u32 %s62, 1
        %s261 = smul.addr %s260, 32
        %s262 = scalar_lea.vmem [#allocation3], %s261
        // Predicated region
        $region63: #{tpu_custom_call.1} parent=57 // pred_check
          %p263 = pneg %p72
        $region64: #{tpu_custom_call.1} parent=57 // pred_check_branch
          %265 = sbr.rel (%p263) target = $region66
        $region65: #{tpu_custom_call.1} parent=57 // pred_region
          %s266 = smul.addr %s16, 8
          %s267 = sadd.s32 %s17, %s266
          %s268 = smul.addr %s267, 8
          %s269 = scalar_lea.vmem %s1, %s268
          // Predicated region
          $region67: #{tpu_custom_call.1} parent=65 // pred_check
            _
          $region68: #{tpu_custom_call.1} parent=65 // pred_check_branch
            %271 = sbr.rel (0) target = $region70
          $region69: #{tpu_custom_call.1} parent=65 // pred_region
            // Predicated region
            $region71: #{tpu_custom_call.1} parent=69 // pred_check
              _
            $region72: #{tpu_custom_call.1} parent=69 // pred_check_branch
              %273 = sbr.rel (0) target = $region74
            $region73: #{tpu_custom_call.1} parent=69 // pred_region
              // Predicated region
              $region86: #{tpu_custom_call.1} parent=73 // pred_check
                _
              $region87: #{tpu_custom_call.1} parent=73 // pred_check_branch
                %294 = sbr.rel (0) target = $region89
              $region88: #{tpu_custom_call.1} parent=73 // pred_region
                loop: start=0, step=1, limit=1
                $region90: #{tpu_custom_call.1} parent=88 // loop_pre_header
                  _
                $region91: #{tpu_custom_call.1} parent=88 // loop_header
                  %s296 = sphi 0, %s300
                  %p297 = scmp.ge.s32.totalorder %s296, 1
                  %s301 = sphi %s262, %s262
                  %s302 = sphi %s269, %s269
                $region92: #{tpu_custom_call.1} parent=88 // loop_header_branch
                  %299 = sbr.rel (%p297) target = $region96
                $region93: #{tpu_custom_call.1} parent=88 // loop_body
                  %v303 = vld [vmem:[%s301] sm:$0xff]
                  %304 = vst [vmem:[%s302] sm:$0xff] %v303
                  %v305 = vld [vmem:[%s301 + $0x8] sm:$0xff]
                  %306 = vst [vmem:[%s302 + $0x10] sm:$0xff] %v305
                  %v307 = vld [vmem:[%s301 + $0x10] sm:$0xff]
                  %308 = vst [vmem:[%s302 + $0x20] sm:$0xff] %v307
                  %v309 = vld [vmem:[%s301 + $0x18] sm:$0xff]
                  %310 = vst [vmem:[%s302 + $0x30] sm:$0xff] %v309
                $region94: #{tpu_custom_call.1} parent=88 // loop_footer
                  %s300 = sadd.s32 1, %s296
                $region95: #{tpu_custom_call.1} parent=88 // loop_footer_branch
                  %295 = sbr.rel target = $region91
                $region96: #{tpu_custom_call.1} parent=88 // loop_exit
                  _
              $region89: #{tpu_custom_call.1} parent=73 // pred_fallthru
                _
              // Predicated region
              $region97: #{tpu_custom_call.1} parent=73 // pred_check
                _
              $region98: #{tpu_custom_call.1} parent=73 // pred_check_branch
                %312 = sbr.rel target = $region100
              $region99: #{tpu_custom_call.1} parent=73 // pred_region
                _
              $region100: #{tpu_custom_call.1} parent=73 // pred_fallthru
                _
            $region74: #{tpu_custom_call.1} parent=69 // pred_fallthru
              _
            // Predicated region
            $region75: #{tpu_custom_call.1} parent=69 // pred_check
              _
            $region76: #{tpu_custom_call.1} parent=69 // pred_check_branch
              %275 = sbr.rel target = $region78
            $region77: #{tpu_custom_call.1} parent=69 // pred_region
              loop: start=0, step=1, limit=1
              $region79: #{tpu_custom_call.1} parent=77 // loop_pre_header
                _
              $region80: #{tpu_custom_call.1} parent=77 // loop_header
                %s278 = sphi 0, %s282
                %p279 = scmp.ge.s32.totalorder %s278, 1
                %s283 = sphi %s262, %s262
                %s284 = sphi %s269, %s269
              $region81: #{tpu_custom_call.1} parent=77 // loop_header_branch
                %281 = sbr.rel (%p279) target = $region85
              $region82: #{tpu_custom_call.1} parent=77 // loop_body
                %v285 = vld [vmem:[%s283] sm:$0xff]
                %286 = vst [vmem:[%s284] sm:$0xff] %v285
                %v287 = vld [vmem:[%s283 + $0x8] sm:$0xff]
                %288 = vst [vmem:[%s284 + $0x10] sm:$0xff] %v287
                %v289 = vld [vmem:[%s283 + $0x10] sm:$0xff]
                %290 = vst [vmem:[%s284 + $0x20] sm:$0xff] %v289
                %v291 = vld [vmem:[%s283 + $0x18] sm:$0xff]
                %292 = vst [vmem:[%s284 + $0x30] sm:$0xff] %v291
              $region83: #{tpu_custom_call.1} parent=77 // loop_footer
                %s282 = sadd.s32 1, %s278
              $region84: #{tpu_custom_call.1} parent=77 // loop_footer_branch
                %277 = sbr.rel target = $region80
              $region85: #{tpu_custom_call.1} parent=77 // loop_exit
                _
            $region78: #{tpu_custom_call.1} parent=69 // pred_fallthru
              _
          $region70: #{tpu_custom_call.1} parent=65 // pred_fallthru
            _
          %313 = vnop
        $region66: #{tpu_custom_call.1} parent=57 // pred_fallthru
          _
      $region58: #{tpu_custom_call.1} parent=5 // pred_fallthru
        _
      %p314 = scmp.le.s32.totalorder 2, %s7
      // Predicated region
      $region101: #{tpu_custom_call.1} parent=5 // pred_check
        %p315 = pneg %p314
      $region102: #{tpu_custom_call.1} parent=5 // pred_check_branch
        %317 = sbr.rel (%p315) target = $region104
      $region103: #{tpu_custom_call.1} parent=5 // pred_region
        %s318 = ssub.s32 %s7, 2
        // Predicated region
        $region105: #{tpu_custom_call.1} parent=103 // pred_check
          %p319 = pneg %p78
        $region106: #{tpu_custom_call.1} parent=103 // pred_check_branch
          %321 = sbr.rel (%p319) target = $region108
        $region107: #{tpu_custom_call.1} parent=103 // pred_region
          %s322 = sand.u32 %s63, 1
          %s323 = sand.u32 %s63, 1
          %s324 = smul.addr %s323, 32
          %s325 = scalar_lea.vmem [#allocation3], %s324
        $region108: #{tpu_custom_call.1} parent=103 // pred_fallthru
          _
      $region104: #{tpu_custom_call.1} parent=5 // pred_fallthru
        _
    $region6: #{tpu_custom_call.1} parent=1 // loop_footer
      %s11 = sadd.s32 1, %s7
    $region7: #{tpu_custom_call.1} parent=1 // loop_footer_branch
      %6 = sbr.rel target = $region3
    $region8: #{tpu_custom_call.1} parent=1 // loop_exit
      _

</llo_original>
